<compile_context>
chip_gen: v7x
topology: tpu7x:2x2x1
jax: 0.10.0
libtpu: 0.0.40
codegen_flags: <defaults>
</compile_context>

<pallas_src>
import jax
import jax.numpy as jnp
from jax.experimental import pallas as pl
from jax.experimental.pallas import tpu as pltpu


def _timepara_kernel(x_ref, w1_ref, b1_ref, w2_ref, b2_ref, wh_ref, bh_ref,
                     w_out_ref, b_out_ref):
    cd = w1_ref.dtype
    # x stays f32 in HBM; cast to the matmul dtype after the VMEM load so the
    # bf16 path adds no extra HBM pass (no-op in the f32 path).
    x = x_ref[...].astype(cd)
    # h1 = relu(x @ W1 + b1)            (f32 accumulation on the MXU)
    h = jnp.dot(x, w1_ref[...], preferred_element_type=jnp.float32)
    h = jnp.maximum(h + b1_ref[...], 0.0)
    # h2 = relu(h1 @ W2 + b2)           (dropout is identity in eval mode)
    h = jnp.dot(h.astype(cd), w2_ref[...], preferred_element_type=jnp.float32)
    h = jnp.maximum(h + b2_ref[...], 0.0)
    # fused heads: [weight-cols | bias-cols] = h2 @ [Ww_bd | Wb_bd] + [bw | bb]
    y = jnp.dot(h.astype(cd), wh_ref[...], preferred_element_type=jnp.float32)
    y = y + bh_ref[...]
    y = y * y + 1e-05
    half = y.shape[-1] // 2
    w_out_ref[...] = y[:, :half].astype(w_out_ref.dtype)
    b_out_ref[...] = y[:, half:].astype(b_out_ref.dtype)


def timepara_forward(x, params, fnum, num_marks, *, tile_rows=8192,
                     matmul_dtype=jnp.float32, out_dtype=jnp.float32):
    """x: (B, L, input_dim) float32.

    Returns (weight, bias), each (B, L, num_marks, fnum) in `out_dtype`.
    matmul_dtype=jnp.bfloat16 feeds the MXU bf16 operands (x is cast in-kernel,
    so HBM traffic for x stays at 4 B/elem); accumulation/epilogue stay f32.
    """
    B, L, input_dim = x.shape
    w1, b1, w2, b2, ww, bw, wb, bb = params
    hidden_dim = w1.shape[1]
    out_dim = fnum * num_marks
    N = B * L
    cd = jnp.dtype(matmul_dtype)

    # Lane-packing factor: pack P logical rows per 128-lane row.
    max_dim = max(input_dim, hidden_dim, 2 * out_dim)
    P = max(1, 128 // max_dim)

    x2d = x.reshape(N, input_dim)
    pad_rows = (-N) % P
    if pad_rows:
        # Only hit when B*L is not a multiple of P (tiny; keeps the packed
        # reshape valid).  The row grid itself never requires padding.
        x2d = jnp.pad(x2d, ((0, pad_rows), (0, 0)))
    Np = (N + pad_rows) // P
    xp = x2d.reshape(Np, P * input_dim)            # free row-major view

    def block_diag(w):
        if P == 1:
            return w.astype(cd)
        din, dout = w.shape
        eye = jnp.eye(P, dtype=w.dtype)
        bd = jnp.einsum('pq,io->piqo', eye, w).reshape(P * din, P * dout)
        return bd.astype(cd)

    w1p = block_diag(w1)                                        # (P*in,  P*hid)
    w2p = block_diag(w2)                                        # (P*hid, P*hid)
    # Fused head: all weight-head columns first, then all bias-head columns,
    # so the kernel can emit the two heads with contiguous lane slices.
    whp = jnp.concatenate([block_diag(ww), block_diag(wb)], axis=1)
    b1p = jnp.tile(b1, P).reshape(1, P * hidden_dim).astype(jnp.float32)
    b2p = jnp.tile(b2, P).reshape(1, P * hidden_dim).astype(jnp.float32)
    bhp = jnp.concatenate([jnp.tile(bw, P), jnp.tile(bb, P)]).reshape(
        1, 2 * P * out_dim).astype(jnp.float32)

    # Row tiling in packed rows (8 sublane granularity; big tiles amortize
    # per-grid-step overhead).
    tile_np = max(1, tile_rows // P)
    if tile_np >= Np:
        tile_np = Np
    else:
        tile_np = max(8, (tile_np // 8) * 8)
    num_tiles = pl.cdiv(Np, tile_np)

    def row_spec(d):
        return pl.BlockSpec((tile_np, d), lambda i: (i, 0))

    def resident_spec(shape):
        return pl.BlockSpec(shape, lambda i: (0, 0))

    flops = 2 * N * (input_dim * hidden_dim
                     + hidden_dim * hidden_dim
                     + 2 * hidden_dim * out_dim)
    bytes_accessed = (
        N * input_dim * 4                                        # x (f32 in HBM)
        + P * P * (input_dim * hidden_dim + hidden_dim * hidden_dim
                   + 2 * hidden_dim * out_dim) * cd.itemsize     # weights
        + P * (2 * hidden_dim + 2 * out_dim) * 4                 # biases (f32)
        + 2 * N * out_dim * jnp.dtype(out_dtype).itemsize)       # outputs

    w_out, b_out = pl.pallas_call(
        _timepara_kernel,
        out_shape=(jax.ShapeDtypeStruct((Np, P * out_dim), out_dtype),
                   jax.ShapeDtypeStruct((Np, P * out_dim), out_dtype)),
        grid=(num_tiles,),
        in_specs=[
            row_spec(P * input_dim),                             # x (streamed)
            resident_spec((P * input_dim, P * hidden_dim)),      # W1 (resident)
            resident_spec((1, P * hidden_dim)),                  # b1
            resident_spec((P * hidden_dim, P * hidden_dim)),     # W2
            resident_spec((1, P * hidden_dim)),                  # b2
            resident_spec((P * hidden_dim, 2 * P * out_dim)),    # [Ww|Wb]
            resident_spec((1, 2 * P * out_dim)),                 # [bw|bb]
        ],
        out_specs=(row_spec(P * out_dim), row_spec(P * out_dim)),
        compiler_params=pltpu.CompilerParams(
            dimension_semantics=("parallel",),
            vmem_limit_bytes=48 * 1024 * 1024,
        ),
        cost_estimate=pl.CostEstimate(
            flops=int(flops), transcendentals=0,
            bytes_accessed=int(bytes_accessed)),
    )(xp, w1p, b1p, w2p, b2p, whp, bhp)

    # Free reshapes: packed row p, lane group q holds logical row P*p + q.
    weight = w_out.reshape(Np * P, out_dim)
    bias = b_out.reshape(Np * P, out_dim)
    if pad_rows:
        weight = weight[:N]
        bias = bias[:N]
    # torch .view(bsize, -1, num_marks, fnum): fnum*num_marks splits row-major
    # as (num_marks, fnum).
    weight = weight.reshape(B, L, num_marks, fnum)
    bias = bias.reshape(B, L, num_marks, fnum)
    return weight, bias


def init_params(key, input_dim, hidden_dim, fnum, num_marks):
    """Deterministic init mimicking nn.Linear default (uniform +/- 1/sqrt(fan_in)).
    Weights stored transposed: (in_features, out_features)."""
    out_dim = fnum * num_marks
    ks = jax.random.split(key, 8)

    def lin(kw, kb, fan_in, fan_out):
        bound = 1.0 / jnp.sqrt(fan_in)
        w = jax.random.uniform(kw, (fan_in, fan_out), jnp.float32, -bound, bound)
        b = jax.random.uniform(kb, (fan_out,), jnp.float32, -bound, bound)
        return w, b

    w1, b1 = lin(ks[0], ks[1], input_dim, hidden_dim)
    w2, b2 = lin(ks[2], ks[3], hidden_dim, hidden_dim)
    ww, bw = lin(ks[4], ks[5], hidden_dim, out_dim)
    wb, bb = lin(ks[6], ks[7], hidden_dim, out_dim)
    return (w1, b1, w2, b2, ww, bw, wb, bb)


def reference_forward(x, params, fnum, num_marks):
    """Pure-JAX reference of the PyTorch forward (eval mode)."""
    w1, b1, w2, b2, ww, bw, wb, bb = params
    h = jnp.maximum(x @ w1 + b1, 0.0)
    h = jnp.maximum(h @ w2 + b2, 0.0)
    w = h @ ww + bw
    b = h @ wb + bb
    w = w ** 2 + 1e-05
    b = b ** 2 + 1e-05
    B = x.shape[0]
    return (w.reshape(B, -1, num_marks, fnum), b.reshape(B, -1, num_marks, fnum))


if __name__ == "__main__":
    input_dim, hidden_dim, fnum, num_marks = 32, 32, 4, 4
    B, L = 2, 8

    key = jax.random.PRNGKey(0)
    kx, kp = jax.random.split(key)
    x = jax.random.normal(kx, (B, L, input_dim), jnp.float32)
    params = init_params(kp, input_dim, hidden_dim, fnum, num_marks)

    w_ref, b_ref = reference_forward(x, params, fnum, num_marks)

    # f32 path.
    weight, bias = timepara_forward(x, params, fnum, num_marks)
    jax.block_until_ready(weight)
    jax.block_until_ready(bias)
    assert weight.shape == (B, L, num_marks, fnum)
    assert bias.shape == (B, L, num_marks, fnum)
    assert jnp.allclose(weight, w_ref, atol=1e-4, rtol=1e-4)
    assert jnp.allclose(bias, b_ref, atol=1e-4, rtol=1e-4)

    # bf16 matmul-operand path (x cast in-kernel; weights bf16, f32 accumulate).
    weight_bf, bias_bf = timepara_forward(x, params, fnum, num_marks,
                                          matmul_dtype=jnp.bfloat16)
    jax.block_until_ready(weight_bf)
    jax.block_until_ready(bias_bf)
    assert jnp.allclose(weight_bf, w_ref, atol=5e-2, rtol=1e-1)
    assert jnp.allclose(bias_bf, b_ref, atol=5e-2, rtol=1e-1)

    print("KERNEL_OK")
</pallas_src>

<mosaic_0001>
module attributes {stable_mosaic.version = 11 : i64} {
  func.func @_timepara_kernel(%arg0: i32, %arg1: memref<4x128xf32, #tpu.memory_space<vmem>>, %arg2: memref<128x128xf32, #tpu.memory_space<vmem>>, %arg3: memref<1x128xf32, #tpu.memory_space<vmem>>, %arg4: memref<128x128xf32, #tpu.memory_space<vmem>>, %arg5: memref<1x128xf32, #tpu.memory_space<vmem>>, %arg6: memref<128x128xf32, #tpu.memory_space<vmem>>, %arg7: memref<1x128xf32, #tpu.memory_space<vmem>>, %arg8: memref<4x64xf32, #tpu.memory_space<vmem>>, %arg9: memref<4x64xf32, #tpu.memory_space<vmem>>) attributes {dimension_semantics = [#tpu.dimension_semantics<parallel>], iteration_bounds = array<i64: 1>, scalar_prefetch = 0 : i64, scratch_operands = 0 : i64, tpu.core_type = #tpu.core_type<tc>, window_params = [{transform_indices = @transform_0, window_bounds = array<i64: 4, 128>}, {pipeline_mode = #tpu.pipeline_mode<synchronous>, transform_indices = @transform_1, window_bounds = array<i64: 128, 128>}, {pipeline_mode = #tpu.pipeline_mode<synchronous>, transform_indices = @transform_2, window_bounds = array<i64: 1, 128>}, {pipeline_mode = #tpu.pipeline_mode<synchronous>, transform_indices = @transform_3, window_bounds = array<i64: 128, 128>}, {pipeline_mode = #tpu.pipeline_mode<synchronous>, transform_indices = @transform_4, window_bounds = array<i64: 1, 128>}, {pipeline_mode = #tpu.pipeline_mode<synchronous>, transform_indices = @transform_5, window_bounds = array<i64: 128, 128>}, {pipeline_mode = #tpu.pipeline_mode<synchronous>, transform_indices = @transform_6, window_bounds = array<i64: 1, 128>}, {transform_indices = @transform_7, window_bounds = array<i64: 4, 64>}, {transform_indices = @transform_8, window_bounds = array<i64: 4, 64>}]} {
    %c0 = arith.constant 0 : index
    %c0_0 = arith.constant 0 : index
    %0 = vector.load %arg1[%c0, %c0_0] : memref<4x128xf32, #tpu.memory_space<vmem>>, vector<4x128xf32>
    %c0_1 = arith.constant 0 : index
    %c0_2 = arith.constant 0 : index
    %1 = vector.load %arg2[%c0_1, %c0_2] : memref<128x128xf32, #tpu.memory_space<vmem>>, vector<128x128xf32>
    %cst = arith.constant dense<0.000000e+00> : vector<4x128xf32>
    %2 = tpu.matmul %0, %1, %cst {dimension_numbers = #tpu.dot_dimension_numbers<[1], [0], [0], [1], [0, 0, 1, 1], [], []>} : vector<4x128xf32>, vector<128x128xf32>, vector<4x128xf32> -> vector<4x128xf32>
    %c0_3 = arith.constant 0 : index
    %c0_4 = arith.constant 0 : index
    %3 = vector.load %arg3[%c0_3, %c0_4] : memref<1x128xf32, #tpu.memory_space<vmem>>, vector<1x128xf32>
    %4 = vector.broadcast %3 : vector<1x128xf32> to vector<4x128xf32>
    %5 = arith.addf %2, %4 : vector<4x128xf32>
    %cst_5 = arith.constant 0.000000e+00 : f32
    %6 = vector.broadcast %cst_5 : f32 to vector<4x128xf32>
    %7 = arith.maximumf %5, %6 : vector<4x128xf32>
    %c0_6 = arith.constant 0 : index
    %c0_7 = arith.constant 0 : index
    %8 = vector.load %arg4[%c0_6, %c0_7] : memref<128x128xf32, #tpu.memory_space<vmem>>, vector<128x128xf32>
    %cst_8 = arith.constant dense<0.000000e+00> : vector<4x128xf32>
    %9 = tpu.matmul %7, %8, %cst_8 {dimension_numbers = #tpu.dot_dimension_numbers<[1], [0], [0], [1], [0, 0, 1, 1], [], []>} : vector<4x128xf32>, vector<128x128xf32>, vector<4x128xf32> -> vector<4x128xf32>
    %c0_9 = arith.constant 0 : index
    %c0_10 = arith.constant 0 : index
    %10 = vector.load %arg5[%c0_9, %c0_10] : memref<1x128xf32, #tpu.memory_space<vmem>>, vector<1x128xf32>
    %11 = vector.broadcast %10 : vector<1x128xf32> to vector<4x128xf32>
    %12 = arith.addf %9, %11 : vector<4x128xf32>
    %cst_11 = arith.constant 0.000000e+00 : f32
    %13 = vector.broadcast %cst_11 : f32 to vector<4x128xf32>
    %14 = arith.maximumf %12, %13 : vector<4x128xf32>
    %c0_12 = arith.constant 0 : index
    %c0_13 = arith.constant 0 : index
    %15 = vector.load %arg6[%c0_12, %c0_13] : memref<128x128xf32, #tpu.memory_space<vmem>>, vector<128x128xf32>
    %cst_14 = arith.constant dense<0.000000e+00> : vector<4x128xf32>
    %16 = tpu.matmul %14, %15, %cst_14 {dimension_numbers = #tpu.dot_dimension_numbers<[1], [0], [0], [1], [0, 0, 1, 1], [], []>} : vector<4x128xf32>, vector<128x128xf32>, vector<4x128xf32> -> vector<4x128xf32>
    %c0_15 = arith.constant 0 : index
    %c0_16 = arith.constant 0 : index
    %17 = vector.load %arg7[%c0_15, %c0_16] : memref<1x128xf32, #tpu.memory_space<vmem>>, vector<1x128xf32>
    %18 = vector.broadcast %17 : vector<1x128xf32> to vector<4x128xf32>
    %19 = arith.addf %16, %18 : vector<4x128xf32>
    %20 = arith.mulf %19, %19 : vector<4x128xf32>
    %cst_17 = arith.constant 9.99999974E-6 : f32
    %21 = vector.broadcast %cst_17 : f32 to vector<4x128xf32>
    %22 = arith.addf %20, %21 : vector<4x128xf32>
    %23 = vector.extract_strided_slice %22 {offsets = [0, 0], sizes = [4, 64], strides = [1, 1]} : vector<4x128xf32> to vector<4x64xf32>
    %c0_18 = arith.constant 0 : index
    %c0_19 = arith.constant 0 : index
    %24 = vector.load %arg8[%c0_18, %c0_19] : memref<4x64xf32, #tpu.memory_space<vmem>>, vector<4x64xf32>
    tpu.vector_store %arg8[%c0_18, %c0_19], %23 {strides = array<i32>} : memref<4x64xf32, #tpu.memory_space<vmem>>, vector<4x64xf32>,
    %25 = vector.extract_strided_slice %22 {offsets = [0, 64], sizes = [4, 64], strides = [1, 1]} : vector<4x128xf32> to vector<4x64xf32>
    %c0_20 = arith.constant 0 : index
    %c0_21 = arith.constant 0 : index
    %26 = vector.load %arg9[%c0_20, %c0_21] : memref<4x64xf32, #tpu.memory_space<vmem>>, vector<4x64xf32>
    tpu.vector_store %arg9[%c0_20, %c0_21], %25 {strides = array<i32>} : memref<4x64xf32, #tpu.memory_space<vmem>>, vector<4x64xf32>,
    return
  }
  func.func @transform_0(%arg0: i32) -> (i32, i32) {
    %c0_i32 = arith.constant 0 : i32
    %c0_i32_0 = arith.constant 0 : i32
    return %arg0, %c0_i32 : i32, i32
  }
  func.func @transform_1(%arg0: i32) -> (i32, i32) {
    %c0_i32 = arith.constant 0 : i32
    %c0_i32_0 = arith.constant 0 : i32
    %c0_i32_1 = arith.constant 0 : i32
    return %c0_i32, %c0_i32_0 : i32, i32
  }
  func.func @transform_2(%arg0: i32) -> (i32, i32) {
    %c0_i32 = arith.constant 0 : i32
    %c0_i32_0 = arith.constant 0 : i32
    %c0_i32_1 = arith.constant 0 : i32
    return %c0_i32, %c0_i32_0 : i32, i32
  }
  func.func @transform_3(%arg0: i32) -> (i32, i32) {
    %c0_i32 = arith.constant 0 : i32
    %c0_i32_0 = arith.constant 0 : i32
    %c0_i32_1 = arith.constant 0 : i32
    return %c0_i32, %c0_i32_0 : i32, i32
  }
  func.func @transform_4(%arg0: i32) -> (i32, i32) {
    %c0_i32 = arith.constant 0 : i32
    %c0_i32_0 = arith.constant 0 : i32
    %c0_i32_1 = arith.constant 0 : i32
    return %c0_i32, %c0_i32_0 : i32, i32
  }
  func.func @transform_5(%arg0: i32) -> (i32, i32) {
    %c0_i32 = arith.constant 0 : i32
    %c0_i32_0 = arith.constant 0 : i32
    %c0_i32_1 = arith.constant 0 : i32
    return %c0_i32, %c0_i32_0 : i32, i32
  }
  func.func @transform_6(%arg0: i32) -> (i32, i32) {
    %c0_i32 = arith.constant 0 : i32
    %c0_i32_0 = arith.constant 0 : i32
    %c0_i32_1 = arith.constant 0 : i32
    return %c0_i32, %c0_i32_0 : i32, i32
  }
  func.func @transform_7(%arg0: i32) -> (i32, i32) {
    %c0_i32 = arith.constant 0 : i32
    %c0_i32_0 = arith.constant 0 : i32
    return %arg0, %c0_i32 : i32, i32
  }
  func.func @transform_8(%arg0: i32) -> (i32, i32) {
    %c0_i32 = arith.constant 0 : i32
    %c0_i32_0 = arith.constant 0 : i32
    return %arg0, %c0_i32 : i32, i32
  }
}

</mosaic_0001>

<llo_original>
// kernel: tpu_custom_call.1
$region0: #{tpu_custom_call.1}
  #allocation0 [shape = 'u32[]', space=smem, size = 0x4, offset = 0x4, fixed_abs, tag = 'smem constant byte address 0x4 - core index']
  #allocation1 [shape = 'u32[144,128]{1,0:T(1,128)}', space=vmem, size = 0x12000, scoped, tag = 'internal scratch']
  %s0 = inlined_call_operand.hbm [shape: f32[4,128], index: 0, kind: input, shape index: {}]
  %s1 = inlined_call_operand.hbm [shape: f32[128,128], index: 1, kind: input, shape index: {}]
  %s2 = inlined_call_operand.vmem [shape: f32[1,128], index: 2, kind: input, shape index: {}]
  %s3 = inlined_call_operand.hbm [shape: f32[128,128], index: 3, kind: input, shape index: {}]
  %s4 = inlined_call_operand.vmem [shape: f32[1,128], index: 4, kind: input, shape index: {}]
  %s5 = inlined_call_operand.hbm [shape: f32[128,128], index: 5, kind: input, shape index: {}]
  %s6 = inlined_call_operand.vmem [shape: f32[1,128], index: 6, kind: input, shape index: {}]
  %s7 = inlined_call_operand.hbm [shape: f32[4,64], index: 7, kind: output, shape index: {0}]
  %s8 = inlined_call_operand.hbm [shape: f32[4,64], index: 8, kind: output, shape index: {1}]
  %9 = xla_tuple %s7, %s8
  %s10 = sld [smem:[#allocation0]]
  $region62: #{tpu_custom_call.1} parent=0
    _
  %s12 = ssub.s32 1, %s10
  %s13 = scalar_select 0, %s12, %s10
  $region1: #{tpu_custom_call.1} parent=0
    #allocation2 [shape = 'u8[2048]{0}', space=vmem, size = 0x800, scoped, tag = 'input window, operand 0, single buffered']
    #allocation3 [shape = 's32[1]{0}', space=sflag, size = 0x4, scoped, tag = 'scoped memory for tpu_custom_call.1']
    #allocation4 [shape = 's32[1]{0}', space=sflag, size = 0x4, scoped, tag = 'scoped memory for tpu_custom_call.1']
    #allocation5 [shape = 'u8[65536]{0}', space=vmem, size = 0x10000, scoped, tag = 'input window, operand 1, single buffered']
    #allocation6 [shape = 's32[1]{0}', space=sflag, size = 0x4, scoped, tag = 'scoped memory for tpu_custom_call.1']
    #allocation7 [shape = 'u8[65536]{0}', space=vmem, size = 0x10000, scoped, tag = 'input window, operand 3, single buffered']
    #allocation8 [shape = 'u8[65536]{0}', space=vmem, size = 0x10000, scoped, tag = 'input window, operand 5, single buffered']
    #allocation9 [shape = 's32[1]{0}', space=sflag, size = 0x4, scoped, tag = 'scoped memory for tpu_custom_call.1']
    #allocation10 [shape = 'u8[2048]{0}', space=vmem, size = 0x800, scoped, tag = 'output window, operand 0, single buffered']
    #allocation11 [shape = 'u8[2048]{0}', space=vmem, size = 0x800, scoped, tag = 'output window, operand 1, single buffered']
    #allocation12 [shape = 's32[1]{0}', space=sflag, size = 0x4, scoped, tag = 'scoped memory for tpu_custom_call.1']
    %14 = vsyncpa [#allocation3], 0
    %15 = vsyncpa [#allocation6], 0
    %16 = vsyncpa [#allocation9], 0
    %17 = vsyncpa [#allocation4], 0
    %18 = vsyncpa [#allocation12], 0
    // Predicated region
    $region2: #{tpu_custom_call.1} parent=1 // pred_check
      _
    $region3: #{tpu_custom_call.1} parent=1 // pred_check_branch
      %20 = sbr.rel (0) target = $region5
    $region4: #{tpu_custom_call.1} parent=1 // pred_region
      %s22 = ssub.s32 64, 64
      %23 = vsyncadd [#allocation3], %s22
      %s25 = sshll.u32 [#allocation2], 4
      %s26 = int_to_ptr.vmem [resolvable:$true] %s25
      %28 = dma.hbm_to_vmem [thread:$0]  %s0, 64, %s26, [#allocation3]
    $region5: #{tpu_custom_call.1} parent=1 // pred_fallthru
      _
    // Predicated region
    $region6: #{tpu_custom_call.1} parent=1 // pred_check
      _
    $region7: #{tpu_custom_call.1} parent=1 // pred_check_branch
      %30 = sbr.rel (0) target = $region9
    $region8: #{tpu_custom_call.1} parent=1 // pred_region
      %s32 = ssub.s32 2048, 2048
      %33 = vsyncadd [#allocation6], %s32
      %s34 = sshll.u32 [#allocation5], 4
      %s35 = int_to_ptr.vmem [resolvable:$true] %s34
      %40 = dma.hbm_to_vmem [thread:$0]  %s1, 2048, %s35, [#allocation6], 128, 128, 8
    $region9: #{tpu_custom_call.1} parent=1 // pred_fallthru
      _
    // Predicated region
    $region10: #{tpu_custom_call.1} parent=1 // pred_check
      _
    $region11: #{tpu_custom_call.1} parent=1 // pred_check_branch
      %42 = sbr.rel (0) target = $region13
    $region12: #{tpu_custom_call.1} parent=1 // pred_region
      _
    $region13: #{tpu_custom_call.1} parent=1 // pred_fallthru
      _
    // Predicated region
    $region14: #{tpu_custom_call.1} parent=1 // pred_check
      _
    $region15: #{tpu_custom_call.1} parent=1 // pred_check_branch
      %44 = sbr.rel (0) target = $region17
    $region16: #{tpu_custom_call.1} parent=1 // pred_region
      %s46 = ssub.s32 2048, 2048
      %47 = vsyncadd [#allocation6], %s46
      %s48 = sshll.u32 [#allocation7], 4
      %s49 = int_to_ptr.vmem [resolvable:$true] %s48
      %54 = dma.hbm_to_vmem [thread:$0]  %s3, 2048, %s49, [#allocation6], 128, 128, 8
    $region17: #{tpu_custom_call.1} parent=1 // pred_fallthru
      _
    // Predicated region
    $region18: #{tpu_custom_call.1} parent=1 // pred_check
      _
    $region19: #{tpu_custom_call.1} parent=1 // pred_check_branch
      %56 = sbr.rel (0) target = $region21
    $region20: #{tpu_custom_call.1} parent=1 // pred_region
      _
    $region21: #{tpu_custom_call.1} parent=1 // pred_fallthru
      _
    // Predicated region
    $region22: #{tpu_custom_call.1} parent=1 // pred_check
      _
    $region23: #{tpu_custom_call.1} parent=1 // pred_check_branch
      %58 = sbr.rel (0) target = $region25
    $region24: #{tpu_custom_call.1} parent=1 // pred_region
      %s60 = ssub.s32 2048, 2048
      %61 = vsyncadd [#allocation9], %s60
      %s62 = sshll.u32 [#allocation8], 4
      %s63 = int_to_ptr.vmem [resolvable:$true] %s62
      %68 = dma.hbm_to_vmem [thread:$0]  %s5, 2048, %s63, [#allocation9], 128, 128, 8
    $region25: #{tpu_custom_call.1} parent=1 // pred_fallthru
      _
    // Predicated region
    $region26: #{tpu_custom_call.1} parent=1 // pred_check
      _
    $region27: #{tpu_custom_call.1} parent=1 // pred_check_branch
      %70 = sbr.rel (0) target = $region29
    $region28: #{tpu_custom_call.1} parent=1 // pred_region
      _
    $region29: #{tpu_custom_call.1} parent=1 // pred_fallthru
      _
    // Predicated region
    $region30: #{tpu_custom_call.1} parent=1 // pred_check
      _
    $region31: #{tpu_custom_call.1} parent=1 // pred_check_branch
      %72 = sbr.rel (0) target = $region33
    $region32: #{tpu_custom_call.1} parent=1 // pred_region
      %73 = dma.done [#allocation3], 64
    $region33: #{tpu_custom_call.1} parent=1 // pred_fallthru
      _
    // Predicated region
    $region34: #{tpu_custom_call.1} parent=1 // pred_check
      _
    $region35: #{tpu_custom_call.1} parent=1 // pred_check_branch
      %75 = sbr.rel (0) target = $region37
    $region36: #{tpu_custom_call.1} parent=1 // pred_region
      %76 = dma.done [#allocation6], 2048
    $region37: #{tpu_custom_call.1} parent=1 // pred_fallthru
      _
    // Predicated region
    $region38: #{tpu_custom_call.1} parent=1 // pred_check
      _
    $region39: #{tpu_custom_call.1} parent=1 // pred_check_branch
      %78 = sbr.rel (0) target = $region41
    $region40: #{tpu_custom_call.1} parent=1 // pred_region
      %79 = dma.done [#allocation6], 2048
    $region41: #{tpu_custom_call.1} parent=1 // pred_fallthru
      _
    // Predicated region
    $region42: #{tpu_custom_call.1} parent=1 // pred_check
      _
    $region43: #{tpu_custom_call.1} parent=1 // pred_check_branch
      %81 = sbr.rel (0) target = $region45
    $region44: #{tpu_custom_call.1} parent=1 // pred_region
      %82 = dma.done [#allocation9], 2048
    $region45: #{tpu_custom_call.1} parent=1 // pred_fallthru
      _
    %v83 = vld [vmem:[#allocation2] sm:$0xf]
    %v84 = vld [vmem:[#allocation5] sm:$0xff]
    %v85 = vld [vmem:[#allocation5 + $0x8] sm:$0xff]
    %v86 = vld [vmem:[#allocation5 + $0x10] sm:$0xff]
    %v87 = vld [vmem:[#allocation5 + $0x18] sm:$0xff]
    %v88 = vld [vmem:[#allocation5 + $0x20] sm:$0xff]
    %v89 = vld [vmem:[#allocation5 + $0x28] sm:$0xff]
    %v90 = vld [vmem:[#allocation5 + $0x30] sm:$0xff]
    %v91 = vld [vmem:[#allocation5 + $0x38] sm:$0xff]
    %v92 = vld [vmem:[#allocation5 + $0x40] sm:$0xff]
    %v93 = vld [vmem:[#allocation5 + $0x48] sm:$0xff]
    %v94 = vld [vmem:[#allocation5 + $0x50] sm:$0xff]
    %v95 = vld [vmem:[#allocation5 + $0x58] sm:$0xff]
    %v96 = vld [vmem:[#allocation5 + $0x60] sm:$0xff]
    %v97 = vld [vmem:[#allocation5 + $0x68] sm:$0xff]
    %v98 = vld [vmem:[#allocation5 + $0x70] sm:$0xff]
    %v99 = vld [vmem:[#allocation5 + $0x78] sm:$0xff]
    %v100 = vld [vmem:[%s2] sm:$0x1]
    %v102 = vlaneseq
    %v103 = vshrl.u32 %v102, 7
    %v104 = vsub.s32 0, %v103
    %v105 = vrot.slane %v100, %v104
    %107 = vmatprep.subr.mxu0 0.0
    %108 = vmatpush1.msra.mxu0 %v84
    %109 = vmatprep.subr.mxu0 0.0
    %110 = vmatpush1.msra.mxu0 %v85
    %111 = vmatprep.subr.mxu0 0.0
    %112 = vmatpush1.msra.mxu0 %v86
    %113 = vmatprep.subr.mxu0 0.0
    %114 = vmatpush1.msra.mxu0 %v87
    %115 = vmatprep.subr.mxu0 0.0
    %116 = vmatpush1.msra.mxu0 %v88
    %117 = vmatprep.subr.mxu0 0.0
    %118 = vmatpush1.msra.mxu0 %v89
    %119 = vmatprep.subr.mxu0 0.0
    %120 = vmatpush1.msra.mxu0 %v90
    %121 = vmatprep.subr.mxu0 0.0
    %122 = vmatpush1.msra.mxu0 %v91
    %123 = vmatprep.subr.mxu0 0.0
    %124 = vmatpush1.msra.mxu0 %v92
    %125 = vmatprep.subr.mxu0 0.0
    %126 = vmatpush1.msra.mxu0 %v93
    %127 = vmatprep.subr.mxu0 0.0
    %128 = vmatpush1.msra.mxu0 %v94
    %129 = vmatprep.subr.mxu0 0.0
    %130 = vmatpush1.msra.mxu0 %v95
    %131 = vmatprep.subr.mxu0 0.0
    %132 = vmatpush1.msra.mxu0 %v96
    %133 = vmatprep.subr.mxu0 0.0
    %134 = vmatpush1.msra.mxu0 %v97
    %135 = vmatprep.subr.mxu0 0.0
    %136 = vmatpush1.msra.mxu0 %v98
    %137 = vmatprep.subr.mxu0 0.0
    %138 = vmatpush1.msra.mxu0 %v99
    %139 = vmatprep.subr.mxu0 0.0
    %140 = vmatpush1.msra.mxu0 0.0
    %141 = vmatprep.subr.mxu0 0.0
    %142 = vmatpush1.msra.mxu0 0.0
    %143 = vmatprep.subr.mxu0 0.0
    %144 = vmatpush1.msra.mxu0 0.0
    %145 = vmatprep.subr.mxu0 0.0
    %146 = vmatpush1.msra.mxu0 0.0
    %147 = vmatprep.subr.mxu0 0.0
    %148 = vmatpush1.msra.mxu0 0.0
    %149 = vmatprep.subr.mxu0 0.0
    %150 = vmatpush1.msra.mxu0 0.0
    %151 = vmatprep.subr.mxu0 0.0
    %152 = vmatpush1.msra.mxu0 0.0
    %153 = vmatprep.subr.mxu0 0.0
    %154 = vmatpush1.msra.mxu0 0.0
    %155 = vmatprep.subr.mxu0 0.0
    %156 = vmatpush1.msra.mxu0 0.0
    %157 = vmatprep.subr.mxu0 0.0
    %158 = vmatpush1.msra.mxu0 0.0
    %159 = vmatprep.subr.mxu0 0.0
    %160 = vmatpush1.msra.mxu0 0.0
    %161 = vmatprep.subr.mxu0 0.0
    %162 = vmatpush1.msra.mxu0 0.0
    %163 = vmatprep.subr.mxu0 0.0
    %164 = vmatpush1.msra.mxu0 0.0
    %165 = vmatprep.subr.mxu0 0.0
    %166 = vmatpush1.msra.mxu0 0.0
    %167 = vmatprep.subr.mxu0 0.0
    %168 = vmatpush1.msra.mxu0 0.0
    %169 = vmatprep.subr.mxu0 0.0
    %170 = vmatpush1.msra.mxu0 0.0
    %171 = vmatprep.mubr.f32.mxu0 0.0
    %172 = vmatmul.mubr.f32.gmra.mrb[0].mxu0 %v83
    %v173 = vpop.f32.mrb[0].mxu0
    %v174 = vadd.f32 %v105, %v173
    %v175 = vpop.f32.mrb[0].mxu0
    %176 = vdwg.mxu0
    %v177 = vmax.f32 %v174, 0.0
    %v178 = vld [vmem:[#allocation7] sm:$0xff]
    %v179 = vld [vmem:[#allocation7 + $0x8] sm:$0xff]
    %v180 = vld [vmem:[#allocation7 + $0x10] sm:$0xff]
    %v181 = vld [vmem:[#allocation7 + $0x18] sm:$0xff]
    %v182 = vld [vmem:[#allocation7 + $0x20] sm:$0xff]
    %v183 = vld [vmem:[#allocation7 + $0x28] sm:$0xff]
    %v184 = vld [vmem:[#allocation7 + $0x30] sm:$0xff]
    %v185 = vld [vmem:[#allocation7 + $0x38] sm:$0xff]
    %v186 = vld [vmem:[#allocation7 + $0x40] sm:$0xff]
    %v187 = vld [vmem:[#allocation7 + $0x48] sm:$0xff]
    %v188 = vld [vmem:[#allocation7 + $0x50] sm:$0xff]
    %v189 = vld [vmem:[#allocation7 + $0x58] sm:$0xff]
    %v190 = vld [vmem:[#allocation7 + $0x60] sm:$0xff]
    %v191 = vld [vmem:[#allocation7 + $0x68] sm:$0xff]
    %v192 = vld [vmem:[#allocation7 + $0x70] sm:$0xff]
    %v193 = vld [vmem:[#allocation7 + $0x78] sm:$0xff]
    %v194 = vld [vmem:[%s4] sm:$0x1]
    %v196 = vlaneseq
    %v197 = vshrl.u32 %v196, 7
    %v198 = vsub.s32 0, %v197
    %v199 = vrot.slane %v194, %v198
    %201 = vmatprep.subr.mxu0 0.0
    %202 = vmatpush1.msra.mxu0 %v178
    %203 = vmatprep.subr.mxu0 0.0
    %204 = vmatpush1.msra.mxu0 %v179
    %205 = vmatprep.subr.mxu0 0.0
    %206 = vmatpush1.msra.mxu0 %v180
    %207 = vmatprep.subr.mxu0 0.0
    %208 = vmatpush1.msra.mxu0 %v181
    %209 = vmatprep.subr.mxu0 0.0
    %210 = vmatpush1.msra.mxu0 %v182
    %211 = vmatprep.subr.mxu0 0.0
    %212 = vmatpush1.msra.mxu0 %v183
    %213 = vmatprep.subr.mxu0 0.0
    %214 = vmatpush1.msra.mxu0 %v184
    %215 = vmatprep.subr.mxu0 0.0
    %216 = vmatpush1.msra.mxu0 %v185
    %217 = vmatprep.subr.mxu0 0.0
    %218 = vmatpush1.msra.mxu0 %v186
    %219 = vmatprep.subr.mxu0 0.0
    %220 = vmatpush1.msra.mxu0 %v187
    %221 = vmatprep.subr.mxu0 0.0
    %222 = vmatpush1.msra.mxu0 %v188
    %223 = vmatprep.subr.mxu0 0.0
    %224 = vmatpush1.msra.mxu0 %v189
    %225 = vmatprep.subr.mxu0 0.0
    %226 = vmatpush1.msra.mxu0 %v190
    %227 = vmatprep.subr.mxu0 0.0
    %228 = vmatpush1.msra.mxu0 %v191
    %229 = vmatprep.subr.mxu0 0.0
    %230 = vmatpush1.msra.mxu0 %v192
    %231 = vmatprep.subr.mxu0 0.0
    %232 = vmatpush1.msra.mxu0 %v193
    %233 = vmatprep.subr.mxu0 0.0
    %234 = vmatpush1.msra.mxu0 0.0
    %235 = vmatprep.subr.mxu0 0.0
    %236 = vmatpush1.msra.mxu0 0.0
    %237 = vmatprep.subr.mxu0 0.0
    %238 = vmatpush1.msra.mxu0 0.0
    %239 = vmatprep.subr.mxu0 0.0
    %240 = vmatpush1.msra.mxu0 0.0
    %241 = vmatprep.subr.mxu0 0.0
    %242 = vmatpush1.msra.mxu0 0.0
    %243 = vmatprep.subr.mxu0 0.0
    %244 = vmatpush1.msra.mxu0 0.0
    %245 = vmatprep.subr.mxu0 0.0
    %246 = vmatpush1.msra.mxu0 0.0
    %247 = vmatprep.subr.mxu0 0.0
    %248 = vmatpush1.msra.mxu0 0.0
    %249 = vmatprep.subr.mxu0 0.0
    %250 = vmatpush1.msra.mxu0 0.0
    %251 = vmatprep.subr.mxu0 0.0
    %252 = vmatpush1.msra.mxu0 0.0
    %253 = vmatprep.subr.mxu0 0.0
    %254 = vmatpush1.msra.mxu0 0.0
    %255 = vmatprep.subr.mxu0 0.0
    %256 = vmatpush1.msra.mxu0 0.0
    %257 = vmatprep.subr.mxu0 0.0
    %258 = vmatpush1.msra.mxu0 0.0
    %259 = vmatprep.subr.mxu0 0.0
    %260 = vmatpush1.msra.mxu0 0.0
    %261 = vmatprep.subr.mxu0 0.0
    %262 = vmatpush1.msra.mxu0 0.0
    %263 = vmatprep.subr.mxu0 0.0
    %264 = vmatpush1.msra.mxu0 0.0
    %265 = vmatprep.mubr.f32.mxu0 0.0
    %266 = vmatmul.mubr.f32.gmra.mrb[0].mxu0 %v177
    %v267 = vpop.f32.mrb[0].mxu0
    %v268 = vadd.f32 %v199, %v267
    %v269 = vpop.f32.mrb[0].mxu0
    %270 = vdwg.mxu0
    %v271 = vmax.f32 %v268, 0.0
    %v272 = vld [vmem:[#allocation8] sm:$0xff]
    %v273 = vld [vmem:[#allocation8 + $0x8] sm:$0xff]
    %v274 = vld [vmem:[#allocation8 + $0x10] sm:$0xff]
    %v275 = vld [vmem:[#allocation8 + $0x18] sm:$0xff]
    %v276 = vld [vmem:[#allocation8 + $0x20] sm:$0xff]
    %v277 = vld [vmem:[#allocation8 + $0x28] sm:$0xff]
    %v278 = vld [vmem:[#allocation8 + $0x30] sm:$0xff]
    %v279 = vld [vmem:[#allocation8 + $0x38] sm:$0xff]
    %v280 = vld [vmem:[#allocation8 + $0x40] sm:$0xff]
    %v281 = vld [vmem:[#allocation8 + $0x48] sm:$0xff]
    %v282 = vld [vmem:[#allocation8 + $0x50] sm:$0xff]
    %v283 = vld [vmem:[#allocation8 + $0x58] sm:$0xff]
    %v284 = vld [vmem:[#allocation8 + $0x60] sm:$0xff]
    %v285 = vld [vmem:[#allocation8 + $0x68] sm:$0xff]
    %v286 = vld [vmem:[#allocation8 + $0x70] sm:$0xff]
    %v287 = vld [vmem:[#allocation8 + $0x78] sm:$0xff]
    %v288 = vld [vmem:[%s6] sm:$0x1]
    %v290 = vlaneseq
    %v291 = vshrl.u32 %v290, 7
    %v292 = vsub.s32 0, %v291
    %v293 = vrot.slane %v288, %v292
    %295 = vmatprep.subr.mxu0 0.0
    %296 = vmatpush1.msra.mxu0 %v272
    %297 = vmatprep.subr.mxu0 0.0
    %298 = vmatpush1.msra.mxu0 %v273
    %299 = vmatprep.subr.mxu0 0.0
    %300 = vmatpush1.msra.mxu0 %v274
    %301 = vmatprep.subr.mxu0 0.0
    %302 = vmatpush1.msra.mxu0 %v275
    %303 = vmatprep.subr.mxu0 0.0
    %304 = vmatpush1.msra.mxu0 %v276
    %305 = vmatprep.subr.mxu0 0.0
    %306 = vmatpush1.msra.mxu0 %v277
    %307 = vmatprep.subr.mxu0 0.0
    %308 = vmatpush1.msra.mxu0 %v278
    %309 = vmatprep.subr.mxu0 0.0
    %310 = vmatpush1.msra.mxu0 %v279
    %311 = vmatprep.subr.mxu0 0.0
    %312 = vmatpush1.msra.mxu0 %v280
    %313 = vmatprep.subr.mxu0 0.0
    %314 = vmatpush1.msra.mxu0 %v281
    %315 = vmatprep.subr.mxu0 0.0
    %316 = vmatpush1.msra.mxu0 %v282
    %317 = vmatprep.subr.mxu0 0.0
    %318 = vmatpush1.msra.mxu0 %v283
    %319 = vmatprep.subr.mxu0 0.0
    %320 = vmatpush1.msra.mxu0 %v284
    %321 = vmatprep.subr.mxu0 0.0
    %322 = vmatpush1.msra.mxu0 %v285
    %323 = vmatprep.subr.mxu0 0.0
    %324 = vmatpush1.msra.mxu0 %v286
    %325 = vmatprep.subr.mxu0 0.0
    %326 = vmatpush1.msra.mxu0 %v287
    %327 = vmatprep.subr.mxu0 0.0
    %328 = vmatpush1.msra.mxu0 0.0
    %329 = vmatprep.subr.mxu0 0.0
    %330 = vmatpush1.msra.mxu0 0.0
    %331 = vmatprep.subr.mxu0 0.0
    %332 = vmatpush1.msra.mxu0 0.0
    %333 = vmatprep.subr.mxu0 0.0
    %334 = vmatpush1.msra.mxu0 0.0
    %335 = vmatprep.subr.mxu0 0.0
    %336 = vmatpush1.msra.mxu0 0.0
    %337 = vmatprep.subr.mxu0 0.0
    %338 = vmatpush1.msra.mxu0 0.0
    %339 = vmatprep.subr.mxu0 0.0
    %340 = vmatpush1.msra.mxu0 0.0
    %341 = vmatprep.subr.mxu0 0.0
    %342 = vmatpush1.msra.mxu0 0.0
    %343 = vmatprep.subr.mxu0 0.0
    %344 = vmatpush1.msra.mxu0 0.0
    %345 = vmatprep.subr.mxu0 0.0
    %346 = vmatpush1.msra.mxu0 0.0
    %347 = vmatprep.subr.mxu0 0.0
    %348 = vmatpush1.msra.mxu0 0.0
    %349 = vmatprep.subr.mxu0 0.0
    %350 = vmatpush1.msra.mxu0 0.0
    %351 = vmatprep.subr.mxu0 0.0
    %352 = vmatpush1.msra.mxu0 0.0
    %353 = vmatprep.subr.mxu0 0.0
    %354 = vmatpush1.msra.mxu0 0.0
    %355 = vmatprep.subr.mxu0 0.0
    %356 = vmatpush1.msra.mxu0 0.0
    %357 = vmatprep.subr.mxu0 0.0
    %358 = vmatpush1.msra.mxu0 0.0
    %359 = vmatprep.mubr.f32.mxu0 0.0
    %360 = vmatmul.mubr.f32.gmra.mrb[0].mxu0 %v271
    %v361 = vpop.f32.mrb[0].mxu0
    %v362 = vadd.f32 %v293, %v361
    %v363 = vpop.f32.mrb[0].mxu0
    %364 = vdwg.mxu0
    %v365 = vmul.f32 %v362, %v362
    %v366 = vadd.f32 %v365, 1e-05
    %vm367 = vcmask 519168
    %368 = vst.msk [vmem:[#allocation10] sm:$0xf] %vm367, %v366
    %370 = vrot.lane.b32.xlu0 %v366, 64
    %v371 = vpop.permute.xlu0 %370
    %373 = vst.msk [vmem:[#allocation11] sm:$0xf] %vm367, %v371
    // Predicated region
    $region46: #{tpu_custom_call.1} parent=1 // pred_check
      _
    $region47: #{tpu_custom_call.1} parent=1 // pred_check_branch
      %375 = sbr.rel (0) target = $region49
    $region48: #{tpu_custom_call.1} parent=1 // pred_region
      %s377 = ssub.s32 64, 64
      %378 = vsyncadd [#allocation4], %s377
      %s380 = sshll.u32 [#allocation10], 4
      %s381 = int_to_ptr.vmem [resolvable:$true] %s380
      %383 = dma.vmem_to_hbm [thread:$0]  %s381, 64, %s7, [#allocation4]
    $region49: #{tpu_custom_call.1} parent=1 // pred_fallthru
      _
    // Predicated region
    $region50: #{tpu_custom_call.1} parent=1 // pred_check
      _
    $region51: #{tpu_custom_call.1} parent=1 // pred_check_branch
      %385 = sbr.rel (0) target = $region53
    $region52: #{tpu_custom_call.1} parent=1 // pred_region
      %s387 = ssub.s32 64, 64
      %388 = vsyncadd [#allocation12], %s387
      %s390 = sshll.u32 [#allocation11], 4
      %s391 = int_to_ptr.vmem [resolvable:$true] %s390
      %393 = dma.vmem_to_hbm [thread:$0]  %s391, 64, %s8, [#allocation12]
    $region53: #{tpu_custom_call.1} parent=1 // pred_fallthru
      _
    // Predicated region
    $region54: #{tpu_custom_call.1} parent=1 // pred_check
      _
    $region55: #{tpu_custom_call.1} parent=1 // pred_check_branch
      %395 = sbr.rel (0) target = $region57
    $region56: #{tpu_custom_call.1} parent=1 // pred_region
      %396 = dma.done [#allocation4], 64
    $region57: #{tpu_custom_call.1} parent=1 // pred_fallthru
      _
    // Predicated region
    $region58: #{tpu_custom_call.1} parent=1 // pred_check
      _
    $region59: #{tpu_custom_call.1} parent=1 // pred_check_branch
      %398 = sbr.rel (0) target = $region61
    $region60: #{tpu_custom_call.1} parent=1 // pred_region
      %399 = dma.done [#allocation12], 64
    $region61: #{tpu_custom_call.1} parent=1 // pred_fallthru
      _
    %400 = vsyncpa [#allocation3], 1
    %401 = vsyncpa [#allocation6], 1
    %402 = vsyncpa [#allocation9], 1
    %403 = vsyncpa [#allocation4], 1
    %404 = vsyncpa [#allocation12], 1

</llo_original>
